<compile_context>
chip_gen: v7x
topology: tpu7x:2x2x1
jax: 0.10.0
libtpu: 0.0.40
codegen_flags: <defaults>
</compile_context>

<pallas_src>
import functools

import jax
import jax.numpy as jnp
import numpy as np
from jax.experimental import pallas as pl
from jax.experimental.pallas import tpu as pltpu

EPS = 1e-5  # module sets self.eps = 1e-05 in __init__


def _sigmoid(x):
    return 1.0 / (1.0 + jnp.exp(-x))


# ----------------------------------------------------------------------------
# Kernel A: 1x1 conv + sigmoid + offset scaling + reference-point add
#   q_ref    : (TM, C)        BEV queries (batch collapsed into M)
#   w_ref    : (C, GPD)       conv weight
#   coef_ref : (6, GPD)       rows = [bias, scale, shift, mask_x, mask_y, mask_z]
#   ref_ref  : (TM, 3)        pc_range-scaled reference points
#   out_ref  : (TM, GPD)      sample points, column order (g p d), d fastest
# ----------------------------------------------------------------------------
def _sample_points_kernel(q_ref, w_ref, coef_ref, ref_ref, out_ref):
    logits = jnp.dot(q_ref[...], w_ref[...],
                     preferred_element_type=jnp.float32) + coef_ref[0:1, :]
    off = _sigmoid(logits) * coef_ref[1:2, :] + coef_ref[2:3, :]
    ref = ref_ref[...]
    # broadcast the (x, y, z) reference to all G*P*3 columns via per-d masks (in VMEM,
    # no G*P-tiled HBM array).
    ref_gpd = (ref[:, 0:1] * coef_ref[3:4, :]
               + ref[:, 1:2] * coef_ref[4:5, :]
               + ref[:, 2:3] * coef_ref[5:6, :])
    out_ref[...] = ref_gpd + off


# ----------------------------------------------------------------------------
# Kernel B: lidar->image projection + masked separable bilinear sampling,
#           summed over cameras (grid axis n, reduction last / "arbitrary").
#   pts_ref  : (3, S)              lane-dense sample points for this batch
#   l2i_ref  : (4, 4)              lidar2img for this (b, n)
#   feat_ref : (Cf, Hf, Wf)        native feature layout for this (b, n)
#   out_ref  : (Cf, S)             resident accumulator (lane-dense, S multiple of 128)
# ----------------------------------------------------------------------------
def _project_sample_kernel(pts_ref, l2i_ref, feat_ref, out_ref, *,
                           img_h, img_w, feat_h, feat_w, eps):
    n = pl.program_id(1)

    pts = pts_ref[...]                       # (3, S)
    M = l2i_ref[...]                         # (4, 4)

    # cam = M[:3, :3] @ pts + M[:3, 3], built from rank-1 broadcasts (no scalar extracts).
    cam = (M[0:3, 0:1] * pts[0:1, :] + M[0:3, 1:2] * pts[1:2, :]
           + M[0:3, 2:3] * pts[2:3, :] + M[0:3, 3:4])                 # (3, S)
    cam_x = cam[0:1, :]
    cam_y = cam[1:2, :]
    homo = cam[2:3, :]

    # Validity computed division-free (exactly equivalent to homo>eps & u,v in (0,1)).
    valid = ((homo > eps) & (cam_x > 0.0) & (cam_x < homo * img_w)
             & (cam_y > 0.0) & (cam_y < homo * img_h)).astype(jnp.float32)  # (1, S)

    # One EUP approx reciprocal + one Newton refinement; constants folded into multipliers.
    homo_nz = jnp.maximum(homo, eps)
    inv0 = pl.reciprocal(homo_nz, approx=True)
    inv = inv0 * (2.0 - homo_nz * inv0)
    # grid_sample semantics: align_corners=False
    x = jnp.clip(cam_x * inv * (float(feat_w) / img_w) - 0.5, -2.0, feat_w + 1.0)
    y = jnp.clip(cam_y * inv * (float(feat_h) / img_h) - 0.5, -2.0, feat_h + 1.0)

    x0f = jnp.floor(x)
    y0f = jnp.floor(y)
    wx1 = x - x0f
    wy1 = y - y0f
    wx0 = 1.0 - wx1
    wy0 = 1.0 - wy1
    x0 = x0f.astype(jnp.int32)
    y0 = y0f.astype(jnp.int32)

    S = pts.shape[1]
    # Separable bilinear weights, lane-dense.  Taps whose integer coordinate falls outside
    # [0, W-1] / [0, H-1] match no column/row -> zero weight == zeros padding (no clamping,
    # so no edge-texel aliasing).  Validity mask is folded into the row weights.
    wi = jax.lax.broadcasted_iota(jnp.int32, (feat_w, S), 0)
    wcolT = (wx0 * (wi == x0).astype(jnp.float32)
             + wx1 * (wi == x0 + 1).astype(jnp.float32))               # (Wf, S)
    hi = jax.lax.broadcasted_iota(jnp.int32, (feat_h, S), 0)
    wrowT = ((wy0 * (hi == y0).astype(jnp.float32)
              + wy1 * (hi == y0 + 1).astype(jnp.float32)) * valid)     # (Hf, S)

    feat = feat_ref[...]                     # (Cf, Hf, Wf), native layout
    cf = feat.shape[0]
    # Stage 1 (MXU): contract over Wf, bf16 inputs / f32 accumulate -> (Cf*Hf, S).
    tmp = jnp.dot(feat.reshape(cf * feat_h, feat_w).astype(jnp.bfloat16),
                  wcolT.astype(jnp.bfloat16),
                  preferred_element_type=jnp.float32)
    tmp = tmp.reshape(cf, feat_h, S)
    # Stage 2 (VPU): weighted reduce over Hf, everything lane-dense (S on lanes).
    contrib = jnp.sum(tmp * wrowT[None, :, :], axis=1)                 # (Cf, S)

    @pl.when(n == 0)
    def _():
        out_ref[...] = contrib

    @pl.when(n != 0)
    def _():
        out_ref[...] += contrib


# ----------------------------------------------------------------------------
# Wrapper == SegSampling.forward
# ----------------------------------------------------------------------------
def seg_sampling_forward(mlvl_feats, bev_query, reference_points, lidar2img,
                         weight, bias, *, num_groups, num_points, pc_range,
                         img_h, img_w):
    B, C, h, w = bev_query.shape
    Q = h * w
    G, P = num_groups, num_points
    GP = G * P
    GPD = GP * 3
    feat = mlvl_feats[0]                       # (B, N, Cf, Hf, Wf); num_levels == 1
    _, N, Cf, Hf, Wf = feat.shape
    S = Q * GP
    BQ = B * Q

    # ---- glue: small layout changes only (no big-tensor transposes / tiles) ----
    q2d = jnp.transpose(bev_query.reshape(B, C, Q), (0, 2, 1)).reshape(BQ, C)

    pc = jnp.asarray(pc_range, jnp.float32)
    ref3 = (reference_points.reshape(BQ, 3) * (pc[3:] - pc[:3]) + pc[:3]).astype(jnp.float32)

    # per-output-channel constants; channel order is (g p d), d fastest
    d_idx = jnp.arange(GPD) % 3
    is_xy = d_idx < 2
    scale = jnp.where(is_xy, (0.25 + EPS) * 2.0, (4.0 + EPS) * 2.0).astype(jnp.float32)
    shift = jnp.where(is_xy, -(0.25 + EPS), -(4.0 + EPS)).astype(jnp.float32)
    coef = jnp.stack([bias.astype(jnp.float32), scale, shift,
                      (d_idx == 0).astype(jnp.float32),
                      (d_idx == 1).astype(jnp.float32),
                      (d_idx == 2).astype(jnp.float32)], axis=0)       # (6, GPD)

    # ---- kernel A: one batch-collapsed matmul ----
    TM = BQ if BQ <= 512 else 512
    grid_m = pl.cdiv(BQ, TM)
    sample_pts = pl.pallas_call(
        _sample_points_kernel,
        out_shape=jax.ShapeDtypeStruct((BQ, GPD), jnp.float32),
        grid=(grid_m,),
        in_specs=[
            pl.BlockSpec((TM, C), lambda i: (i, 0)),
            pl.BlockSpec((C, GPD), lambda i: (0, 0)),
            pl.BlockSpec((6, GPD), lambda i: (0, 0)),
            pl.BlockSpec((TM, 3), lambda i: (i, 0)),
        ],
        out_specs=pl.BlockSpec((TM, GPD), lambda i: (i, 0)),
        compiler_params=pltpu.CompilerParams(dimension_semantics=("parallel",)),
    )(q2d, weight, coef, ref3)

    # ---- glue: lane-dense (B, 3, S) point layout for kernel B (tiny transpose) ----
    pts_dense = jnp.transpose(sample_pts.reshape(B, Q, GP, 3), (0, 3, 1, 2)).reshape(B, 3, S)

    # ---- kernel B: project + separable bilinear sample, accumulate over cameras ----
    kern_b = functools.partial(_project_sample_kernel, img_h=float(img_h),
                               img_w=float(img_w), feat_h=Hf, feat_w=Wf, eps=EPS)
    sampled = pl.pallas_call(
        kern_b,
        out_shape=jax.ShapeDtypeStruct((B, Cf, S), jnp.float32),
        grid=(B, N),                           # reduction axis (cameras) last
        in_specs=[
            pl.BlockSpec((None, 3, S), lambda b, n: (b, 0, 0)),
            pl.BlockSpec((None, None, 4, 4), lambda b, n: (b, n, 0, 0)),
            pl.BlockSpec((None, None, Cf, Hf, Wf), lambda b, n: (b, n, 0, 0, 0)),
        ],
        out_specs=pl.BlockSpec((None, Cf, S), lambda b, n: (b, 0, 0)),
        compiler_params=pltpu.CompilerParams(
            dimension_semantics=("parallel", "arbitrary")),
    )(pts_dense, lidar2img, feat)

    # ---- glue: back to the module's (B, Q, G, P, Cf) output layout ----
    return jnp.transpose(sampled, (0, 2, 1)).reshape(B, Q, G, P, Cf)


# ----------------------------------------------------------------------------
# Deterministic parameter init (mirrors SegSampling.init_weights)
# ----------------------------------------------------------------------------
def init_params(key, embed_dims, num_groups, num_points):
    gp = num_groups * num_points
    weight = jnp.zeros((embed_dims, gp * 3), jnp.float32)      # conv weight zero-init
    bias_xy = jax.random.uniform(key, (gp, 2), jnp.float32, minval=-4.0, maxval=4.0)
    bias_z = jnp.linspace(-0.25, 1.25, gp).astype(jnp.float32)[:, None]
    bias = jnp.concatenate([bias_xy, bias_z], axis=1).reshape(gp * 3)
    return weight, bias


# ----------------------------------------------------------------------------
# Pure-JAX reference for validation
# ----------------------------------------------------------------------------
def reference_forward(mlvl_feats, bev_query, reference_points, lidar2img,
                      weight, bias, *, num_groups, num_points, pc_range,
                      img_h, img_w):
    B, C, h, w = bev_query.shape
    Q = h * w
    G, P = num_groups, num_points
    feat = mlvl_feats[0]
    _, N, Cf, Hf, Wf = feat.shape

    q = jnp.transpose(bev_query.reshape(B, C, Q), (0, 2, 1))
    off = _sigmoid(q @ weight + bias).reshape(B, Q, G, P, 3)
    xy = off[..., :2] * (0.25 + EPS) * 2.0 - (0.25 + EPS)
    z = off[..., 2:3] * (4.0 + EPS) * 2.0 - (4.0 + EPS)
    off = jnp.concatenate([xy, z], -1)

    pc = jnp.asarray(pc_range, jnp.float32)
    ref = reference_points.reshape(B, Q, 1, 1, 3) * (pc[3:] - pc[:3]) + pc[:3]
    pts = ref + off                                             # (B,Q,G,P,3)
    pts4 = jnp.concatenate([pts, jnp.ones(pts.shape[:-1] + (1,), jnp.float32)], -1)

    l2iT = jnp.swapaxes(lidar2img, -1, -2)[:, :, None, None, None, :, :]  # (B,N,1,1,1,4,4)
    p = pts4[:, None]                                                     # (B,1,Q,G,P,4)
    cam = (p[..., 0:1] * l2iT[..., 0, :] + p[..., 1:2] * l2iT[..., 1, :]
           + p[..., 2:3] * l2iT[..., 2, :] + p[..., 3:4] * l2iT[..., 3, :])  # (B,N,Q,G,P,4)

    homo = cam[..., 2:3]
    hz = jnp.maximum(homo, EPS)
    u = cam[..., 0:1] / hz / img_w
    v = cam[..., 1:2] / hz / img_h
    valid = ((homo > EPS) & (u > 0.0) & (u < 1.0) & (v > 0.0) & (v < 1.0)).astype(jnp.float32)

    x = jnp.clip(u * Wf - 0.5, -2.0, Wf + 1.0)
    y = jnp.clip(v * Hf - 0.5, -2.0, Hf + 1.0)
    x0f = jnp.floor(x)
    y0f = jnp.floor(y)
    wx1 = x - x0f
    wy1 = y - y0f
    wx0 = 1.0 - wx1
    wy0 = 1.0 - wy1
    x0 = x0f.astype(jnp.int32)
    y0 = y0f.astype(jnp.int32)

    feat_flat = jnp.transpose(feat, (0, 1, 3, 4, 2)).reshape(B, N, Hf * Wf, Cf)

    def corner(xi, yi, wx, wy):
        inb = ((xi >= 0) & (xi < Wf) & (yi >= 0) & (yi < Hf)).astype(jnp.float32)
        idx = jnp.clip(yi, 0, Hf - 1) * Wf + jnp.clip(xi, 0, Wf - 1)
        idx = idx.reshape(B, N, Q * G * P, 1)
        f = jnp.take_along_axis(feat_flat, idx, axis=2).reshape(B, N, Q, G, P, Cf)
        return f * (wx * wy * inb)

    bil = (corner(x0, y0, wx0, wy0) + corner(x0 + 1, y0, wx1, wy0)
           + corner(x0, y0 + 1, wx0, wy1) + corner(x0 + 1, y0 + 1, wx1, wy1))
    return (bil * valid).sum(axis=1)                            # (B,Q,G,P,Cf)


if __name__ == "__main__":
    B, C, h, w = 2, 32, 8, 8          # batch, embed_dims, BEV grid
    G, P = 1, 8                       # num_groups, num_points
    N, Cf, Hf, Wf = 2, 32, 8, 8       # cameras, feature channels, feature map size
    img_h, img_w = 64, 64             # image size used for normalization
    pc_range = [-10.0, -10.0, -5.0, 10.0, 10.0, 5.0]

    key = jax.random.PRNGKey(0)
    k1, k2, k3, k4, k5 = jax.random.split(key, 5)
    bev_query = jax.random.normal(k1, (B, C, h, w), jnp.float32)
    reference_points = jax.random.uniform(k2, (B, h, w, 3), jnp.float32)
    feat = jax.random.normal(k3, (B, N, Cf, Hf, Wf), jnp.float32)
    mlvl_feats = [feat]

    # deterministic pinhole lidar2img matrices (one per camera, shared across batch)
    f_len, cx, cy = 30.0, img_w / 2.0, img_h / 2.0
    mats = []
    for cam_i in range(N):
        ang = np.pi / 2.0 * cam_i
        ca, sa = np.cos(ang), np.sin(ang)
        R = np.array([[ca, -sa, 0.0], [sa, ca, 0.0], [0.0, 0.0, 1.0]])
        cam_from_lidar = np.array([[0.0, -1.0, 0.0],
                                   [0.0, 0.0, -1.0],
                                   [1.0, 0.0, 0.0]]) @ R
        K = np.array([[f_len, 0.0, cx], [0.0, f_len, cy], [0.0, 0.0, 1.0]])
        proj34 = K @ np.concatenate([cam_from_lidar, np.zeros((3, 1))], axis=1)
        M = np.eye(4)
        M[:3, :] = proj34
        mats.append(M)
    lidar2img = jnp.asarray(np.broadcast_to(np.stack(mats), (B, N, 4, 4)), jnp.float32)

    weight, bias = init_params(k4, C, G, P)
    # perturb the (zero-initialized) conv weight so the matmul path is actually exercised
    weight = weight + 0.05 * jax.random.normal(k5, weight.shape, jnp.float32)

    out = seg_sampling_forward(mlvl_feats, bev_query, reference_points, lidar2img,
                               weight, bias, num_groups=G, num_points=P,
                               pc_range=pc_range, img_h=img_h, img_w=img_w)
    out = jax.block_until_ready(out)

    ref = reference_forward(mlvl_feats, bev_query, reference_points, lidar2img,
                            weight, bias, num_groups=G, num_points=P,
                            pc_range=pc_range, img_h=img_h, img_w=img_w)
    ref = jax.block_until_ready(ref)

    assert out.shape == (B, h * w, G, P, Cf)
    assert float(jnp.abs(ref).max()) > 0.0
    np.testing.assert_allclose(np.asarray(out), np.asarray(ref), rtol=5e-2, atol=5e-2)
    print("KERNEL_OK")
</pallas_src>

<mosaic_0001>
module attributes {stable_mosaic.version = 11 : i64} {
  func.func @_sample_points_kernel(%arg0: i32, %arg1: memref<128x32xf32, #tpu.memory_space<vmem>>, %arg2: memref<32x24xf32, #tpu.memory_space<vmem>>, %arg3: memref<6x24xf32, #tpu.memory_space<vmem>>, %arg4: memref<128x3xf32, #tpu.memory_space<vmem>>, %arg5: memref<128x24xf32, #tpu.memory_space<vmem>>) attributes {dimension_semantics = [#tpu.dimension_semantics<parallel>], iteration_bounds = array<i64: 1>, scalar_prefetch = 0 : i64, scratch_operands = 0 : i64, tpu.core_type = #tpu.core_type<tc>, window_params = [{transform_indices = @transform_0, window_bounds = array<i64: 128, 32>}, {pipeline_mode = #tpu.pipeline_mode<synchronous>, transform_indices = @transform_1, window_bounds = array<i64: 32, 24>}, {pipeline_mode = #tpu.pipeline_mode<synchronous>, transform_indices = @transform_2, window_bounds = array<i64: 6, 24>}, {transform_indices = @transform_3, window_bounds = array<i64: 128, 3>}, {transform_indices = @transform_4, window_bounds = array<i64: 128, 24>}]} {
    %c0 = arith.constant 0 : index
    %c0_0 = arith.constant 0 : index
    %0 = vector.load %arg1[%c0, %c0_0] : memref<128x32xf32, #tpu.memory_space<vmem>>, vector<128x32xf32>
    %c0_1 = arith.constant 0 : index
    %c0_2 = arith.constant 0 : index
    %1 = vector.load %arg2[%c0_1, %c0_2] : memref<32x24xf32, #tpu.memory_space<vmem>>, vector<32x24xf32>
    %cst = arith.constant dense<0.000000e+00> : vector<128x24xf32>
    %2 = tpu.matmul %0, %1, %cst {dimension_numbers = #tpu.dot_dimension_numbers<[1], [0], [0], [1], [0, 0, 1, 1], [], []>} : vector<128x32xf32>, vector<32x24xf32>, vector<128x24xf32> -> vector<128x24xf32>
    %c0_3 = arith.constant 0 : index
    %c0_4 = arith.constant 0 : index
    %3 = vector.load %arg3[%c0_3, %c0_4] : memref<6x24xf32, #tpu.memory_space<vmem>>, vector<1x24xf32>
    %4 = vector.broadcast %3 : vector<1x24xf32> to vector<128x24xf32>
    %5 = arith.addf %2, %4 : vector<128x24xf32>
    %cst_5 = arith.constant 0.000000e+00 : f32
    %6 = vector.broadcast %cst_5 : f32 to vector<128x24xf32>
    %7 = arith.subf %6, %5 : vector<128x24xf32>
    %8 = math.exp %7 : vector<128x24xf32>
    %cst_6 = arith.constant 1.000000e+00 : f32
    %9 = vector.broadcast %cst_6 : f32 to vector<128x24xf32>
    %10 = arith.addf %9, %8 : vector<128x24xf32>
    %cst_7 = arith.constant 1.000000e+00 : f32
    %11 = vector.broadcast %cst_7 : f32 to vector<128x24xf32>
    %12 = arith.divf %11, %10 : vector<128x24xf32>
    %c1 = arith.constant 1 : index
    %c0_8 = arith.constant 0 : index
    %13 = vector.load %arg3[%c1, %c0_8] : memref<6x24xf32, #tpu.memory_space<vmem>>, vector<1x24xf32>
    %14 = vector.broadcast %13 : vector<1x24xf32> to vector<128x24xf32>
    %15 = arith.mulf %12, %14 : vector<128x24xf32>
    %c2 = arith.constant 2 : index
    %c0_9 = arith.constant 0 : index
    %16 = vector.load %arg3[%c2, %c0_9] : memref<6x24xf32, #tpu.memory_space<vmem>>, vector<1x24xf32>
    %17 = vector.broadcast %16 : vector<1x24xf32> to vector<128x24xf32>
    %18 = arith.addf %15, %17 : vector<128x24xf32>
    %c0_10 = arith.constant 0 : index
    %c0_11 = arith.constant 0 : index
    %19 = vector.load %arg4[%c0_10, %c0_11] : memref<128x3xf32, #tpu.memory_space<vmem>>, vector<128x3xf32>
    %20 = vector.extract_strided_slice %19 {offsets = [0, 0], sizes = [128, 1], strides = [1, 1]} : vector<128x3xf32> to vector<128x1xf32>
    %c3 = arith.constant 3 : index
    %c0_12 = arith.constant 0 : index
    %21 = vector.load %arg3[%c3, %c0_12] : memref<6x24xf32, #tpu.memory_space<vmem>>, vector<1x24xf32>
    %22 = vector.broadcast %20 : vector<128x1xf32> to vector<128x24xf32>
    %23 = vector.broadcast %21 : vector<1x24xf32> to vector<128x24xf32>
    %24 = arith.mulf %22, %23 : vector<128x24xf32>
    %25 = vector.extract_strided_slice %19 {offsets = [0, 1], sizes = [128, 1], strides = [1, 1]} : vector<128x3xf32> to vector<128x1xf32>
    %c4 = arith.constant 4 : index
    %c0_13 = arith.constant 0 : index
    %26 = vector.load %arg3[%c4, %c0_13] : memref<6x24xf32, #tpu.memory_space<vmem>>, vector<1x24xf32>
    %27 = vector.broadcast %25 : vector<128x1xf32> to vector<128x24xf32>
    %28 = vector.broadcast %26 : vector<1x24xf32> to vector<128x24xf32>
    %29 = arith.mulf %27, %28 : vector<128x24xf32>
    %30 = arith.addf %24, %29 : vector<128x24xf32>
    %31 = vector.extract_strided_slice %19 {offsets = [0, 2], sizes = [128, 1], strides = [1, 1]} : vector<128x3xf32> to vector<128x1xf32>
    %c5 = arith.constant 5 : index
    %c0_14 = arith.constant 0 : index
    %32 = vector.load %arg3[%c5, %c0_14] : memref<6x24xf32, #tpu.memory_space<vmem>>, vector<1x24xf32>
    %33 = vector.broadcast %31 : vector<128x1xf32> to vector<128x24xf32>
    %34 = vector.broadcast %32 : vector<1x24xf32> to vector<128x24xf32>
    %35 = arith.mulf %33, %34 : vector<128x24xf32>
    %36 = arith.addf %30, %35 : vector<128x24xf32>
    %37 = arith.addf %36, %18 : vector<128x24xf32>
    %c0_15 = arith.constant 0 : index
    %c0_16 = arith.constant 0 : index
    %38 = vector.load %arg5[%c0_15, %c0_16] : memref<128x24xf32, #tpu.memory_space<vmem>>, vector<128x24xf32>
    tpu.vector_store %arg5[%c0_15, %c0_16], %37 {strides = array<i32>} : memref<128x24xf32, #tpu.memory_space<vmem>>, vector<128x24xf32>,
    return
  }
  func.func @transform_0(%arg0: i32) -> (i32, i32) {
    %c0_i32 = arith.constant 0 : i32
    %c0_i32_0 = arith.constant 0 : i32
    return %arg0, %c0_i32 : i32, i32
  }
  func.func @transform_1(%arg0: i32) -> (i32, i32) {
    %c0_i32 = arith.constant 0 : i32
    %c0_i32_0 = arith.constant 0 : i32
    %c0_i32_1 = arith.constant 0 : i32
    return %c0_i32, %c0_i32_0 : i32, i32
  }
  func.func @transform_2(%arg0: i32) -> (i32, i32) {
    %c0_i32 = arith.constant 0 : i32
    %c0_i32_0 = arith.constant 0 : i32
    %c0_i32_1 = arith.constant 0 : i32
    return %c0_i32, %c0_i32_0 : i32, i32
  }
  func.func @transform_3(%arg0: i32) -> (i32, i32) {
    %c0_i32 = arith.constant 0 : i32
    %c0_i32_0 = arith.constant 0 : i32
    return %arg0, %c0_i32 : i32, i32
  }
  func.func @transform_4(%arg0: i32) -> (i32, i32) {
    %c0_i32 = arith.constant 0 : i32
    %c0_i32_0 = arith.constant 0 : i32
    return %arg0, %c0_i32 : i32, i32
  }
}

</mosaic_0001>

<llo_original>
// kernel: tpu_custom_call.1
$region0: #{tpu_custom_call.1}
  #allocation0 [shape = 'u32[]', space=smem, size = 0x4, offset = 0x4, fixed_abs, tag = 'smem constant byte address 0x4 - core index']
  #allocation1 [shape = 'u32[144,128]{1,0:T(1,128)}', space=vmem, size = 0x12000, scoped, tag = 'internal scratch']
  %s0 = inlined_call_operand.vmem [shape: f32[128,32], index: 0, kind: input, shape index: {}]
  %s1 = inlined_call_operand.vmem [shape: f32[32,24], index: 1, kind: input, shape index: {}]
  %s2 = inlined_call_operand.vmem [shape: f32[6,24], index: 2, kind: input, shape index: {}]
  %s3 = inlined_call_operand.vmem [shape: f32[128,3], index: 3, kind: input, shape index: {}]
  %s4 = inlined_call_operand.vmem [shape: f32[128,24], index: 4, kind: output, shape index: {}]
  %s5 = sld [smem:[#allocation0]]
  $region26: #{tpu_custom_call.1} parent=0
    _
  %s7 = ssub.s32 1, %s5
  %s8 = scalar_select 0, %s7, %s5
  // Predicated region
  $region2: #{tpu_custom_call.1} parent=0 // pred_check
    _
  $region3: #{tpu_custom_call.1} parent=0 // pred_check_branch
    %10 = sbr.rel (0) target = $region5
  $region4: #{tpu_custom_call.1} parent=0 // pred_region
    _
  $region5: #{tpu_custom_call.1} parent=0 // pred_fallthru
    _
  // Predicated region
  $region6: #{tpu_custom_call.1} parent=0 // pred_check
    _
  $region7: #{tpu_custom_call.1} parent=0 // pred_check_branch
    %12 = sbr.rel (0) target = $region9
  $region8: #{tpu_custom_call.1} parent=0 // pred_region
    _
  $region9: #{tpu_custom_call.1} parent=0 // pred_fallthru
    _
  // Predicated region
  $region10: #{tpu_custom_call.1} parent=0 // pred_check
    _
  $region11: #{tpu_custom_call.1} parent=0 // pred_check_branch
    %14 = sbr.rel (0) target = $region13
  $region12: #{tpu_custom_call.1} parent=0 // pred_region
    _
  $region13: #{tpu_custom_call.1} parent=0 // pred_fallthru
    _
  // Predicated region
  $region14: #{tpu_custom_call.1} parent=0 // pred_check
    _
  $region15: #{tpu_custom_call.1} parent=0 // pred_check_branch
    %16 = sbr.rel (0) target = $region17
  $region16: #{tpu_custom_call.1} parent=0 // pred_region
    _
  $region17: #{tpu_custom_call.1} parent=0 // pred_fallthru
    _
  %v17 = vld [vmem:[%s0] sm:$0xff]
  %v18 = vld [vmem:[%s0 + $0x8] sm:$0xff]
  %v19 = vld [vmem:[%s0 + $0x10] sm:$0xff]
  %v20 = vld [vmem:[%s0 + $0x18] sm:$0xff]
  %v21 = vld [vmem:[%s0 + $0x20] sm:$0xff]
  %v22 = vld [vmem:[%s0 + $0x28] sm:$0xff]
  %v23 = vld [vmem:[%s0 + $0x30] sm:$0xff]
  %v24 = vld [vmem:[%s0 + $0x38] sm:$0xff]
  %v25 = vld [vmem:[%s0 + $0x40] sm:$0xff]
  %v26 = vld [vmem:[%s0 + $0x48] sm:$0xff]
  %v27 = vld [vmem:[%s0 + $0x50] sm:$0xff]
  %v28 = vld [vmem:[%s0 + $0x58] sm:$0xff]
  %v29 = vld [vmem:[%s0 + $0x60] sm:$0xff]
  %v30 = vld [vmem:[%s0 + $0x68] sm:$0xff]
  %v31 = vld [vmem:[%s0 + $0x70] sm:$0xff]
  %v32 = vld [vmem:[%s0 + $0x78] sm:$0xff]
  %v33 = vld [vmem:[%s1] sm:$0xff]
  %v34 = vld [vmem:[%s1 + $0x8] sm:$0xff]
  %v35 = vld [vmem:[%s1 + $0x10] sm:$0xff]
  %v36 = vld [vmem:[%s1 + $0x18] sm:$0xff]
  %v37 = vld [vmem:[%s2] sm:$0x1]
  %v38 = vlaneseq
  %v39 = vshrl.u32 %v38, 7
  %v40 = vsub.s32 0, %v39
  %v41 = vrot.slane %v37, %v40
  %vm42 = vcmask 261120
  %v44 = vsel %vm42, %v17, 0
  %v47 = vsel %vm42, %v18, 0
  %v50 = vsel %vm42, %v19, 0
  %v53 = vsel %vm42, %v20, 0
  %v56 = vsel %vm42, %v21, 0
  %v59 = vsel %vm42, %v22, 0
  %v62 = vsel %vm42, %v23, 0
  %v65 = vsel %vm42, %v24, 0
  %v68 = vsel %vm42, %v25, 0
  %v71 = vsel %vm42, %v26, 0
  %v74 = vsel %vm42, %v27, 0
  %v77 = vsel %vm42, %v28, 0
  %v80 = vsel %vm42, %v29, 0
  %v83 = vsel %vm42, %v30, 0
  %v86 = vsel %vm42, %v31, 0
  %v89 = vsel %vm42, %v32, 0
  %91 = vmatprep.subr.mxu0 0.0
  %92 = vmatpush1.msra.mxu0 %v33
  %93 = vmatprep.subr.mxu0 0.0
  %94 = vmatpush1.msra.mxu0 %v34
  %95 = vmatprep.subr.mxu0 0.0
  %96 = vmatpush1.msra.mxu0 %v35
  %97 = vmatprep.subr.mxu0 0.0
  %98 = vmatpush1.msra.mxu0 %v36
  %99 = vmatprep.subr.mxu0 0.0
  %100 = vmatpush1.msra.mxu0 0.0
  %101 = vmatprep.subr.mxu0 0.0
  %102 = vmatpush1.msra.mxu0 0.0
  %103 = vmatprep.subr.mxu0 0.0
  %104 = vmatpush1.msra.mxu0 0.0
  %105 = vmatprep.subr.mxu0 0.0
  %106 = vmatpush1.msra.mxu0 0.0
  %107 = vmatprep.subr.mxu0 0.0
  %108 = vmatpush1.msra.mxu0 0.0
  %109 = vmatprep.subr.mxu0 0.0
  %110 = vmatpush1.msra.mxu0 0.0
  %111 = vmatprep.subr.mxu0 0.0
  %112 = vmatpush1.msra.mxu0 0.0
  %113 = vmatprep.subr.mxu0 0.0
  %114 = vmatpush1.msra.mxu0 0.0
  %115 = vmatprep.subr.mxu0 0.0
  %116 = vmatpush1.msra.mxu0 0.0
  %117 = vmatprep.subr.mxu0 0.0
  %118 = vmatpush1.msra.mxu0 0.0
  %119 = vmatprep.subr.mxu0 0.0
  %120 = vmatpush1.msra.mxu0 0.0
  %121 = vmatprep.subr.mxu0 0.0
  %122 = vmatpush1.msra.mxu0 0.0
  %123 = vmatprep.subr.mxu0 0.0
  %124 = vmatpush1.msra.mxu0 0.0
  %125 = vmatprep.subr.mxu0 0.0
  %126 = vmatpush1.msra.mxu0 0.0
  %127 = vmatprep.subr.mxu0 0.0
  %128 = vmatpush1.msra.mxu0 0.0
  %129 = vmatprep.subr.mxu0 0.0
  %130 = vmatpush1.msra.mxu0 0.0
  %131 = vmatprep.subr.mxu0 0.0
  %132 = vmatpush1.msra.mxu0 0.0
  %133 = vmatprep.subr.mxu0 0.0
  %134 = vmatpush1.msra.mxu0 0.0
  %135 = vmatprep.subr.mxu0 0.0
  %136 = vmatpush1.msra.mxu0 0.0
  %137 = vmatprep.subr.mxu0 0.0
  %138 = vmatpush1.msra.mxu0 0.0
  %139 = vmatprep.subr.mxu0 0.0
  %140 = vmatpush1.msra.mxu0 0.0
  %141 = vmatprep.subr.mxu0 0.0
  %142 = vmatpush1.msra.mxu0 0.0
  %143 = vmatprep.subr.mxu0 0.0
  %144 = vmatpush1.msra.mxu0 0.0
  %145 = vmatprep.subr.mxu0 0.0
  %146 = vmatpush1.msra.mxu0 0.0
  %147 = vmatprep.subr.mxu0 0.0
  %148 = vmatpush1.msra.mxu0 0.0
  %149 = vmatprep.subr.mxu0 0.0
  %150 = vmatpush1.msra.mxu0 0.0
  %151 = vmatprep.subr.mxu0 0.0
  %152 = vmatpush1.msra.mxu0 0.0
  %153 = vmatprep.subr.mxu0 0.0
  %154 = vmatpush1.msra.mxu0 0.0
  %155 = vmatprep.mubr.f32.mxu0 0.0
  %156 = vmatmul.mubr.f32.gmra.mrb[0].mxu0 %v44
  %v157 = vpop.f32.mrb[0].mxu0
  %v158 = vadd.f32 %v41, %v157
  %v159 = vpop.f32.mrb[0].mxu0
  %160 = vmatprep.mubr.f32.mxu0 0.0
  %161 = vmatmul.mubr.f32.gmra.mrb[0].mxu0 %v47
  %v162 = vpop.f32.mrb[0].mxu0
  %v163 = vadd.f32 %v41, %v162
  %v164 = vpop.f32.mrb[0].mxu0
  %165 = vmatprep.mubr.f32.mxu0 0.0
  %166 = vmatmul.mubr.f32.gmra.mrb[0].mxu0 %v50
  %v167 = vpop.f32.mrb[0].mxu0
  %v168 = vadd.f32 %v41, %v167
  %v169 = vpop.f32.mrb[0].mxu0
  %170 = vmatprep.mubr.f32.mxu0 0.0
  %171 = vmatmul.mubr.f32.gmra.mrb[0].mxu0 %v53
  %v172 = vpop.f32.mrb[0].mxu0
  %v173 = vadd.f32 %v41, %v172
  %v174 = vpop.f32.mrb[0].mxu0
  %175 = vmatprep.mubr.f32.mxu0 0.0
  %176 = vmatmul.mubr.f32.gmra.mrb[0].mxu0 %v56
  %v177 = vpop.f32.mrb[0].mxu0
  %v178 = vadd.f32 %v41, %v177
  %v179 = vpop.f32.mrb[0].mxu0
  %180 = vmatprep.mubr.f32.mxu0 0.0
  %181 = vmatmul.mubr.f32.gmra.mrb[0].mxu0 %v59
  %v182 = vpop.f32.mrb[0].mxu0
  %v183 = vadd.f32 %v41, %v182
  %v184 = vpop.f32.mrb[0].mxu0
  %185 = vmatprep.mubr.f32.mxu0 0.0
  %186 = vmatmul.mubr.f32.gmra.mrb[0].mxu0 %v62
  %v187 = vpop.f32.mrb[0].mxu0
  %v188 = vadd.f32 %v41, %v187
  %v189 = vpop.f32.mrb[0].mxu0
  %190 = vmatprep.mubr.f32.mxu0 0.0
  %191 = vmatmul.mubr.f32.gmra.mrb[0].mxu0 %v65
  %v192 = vpop.f32.mrb[0].mxu0
  %v193 = vadd.f32 %v41, %v192
  %v194 = vpop.f32.mrb[0].mxu0
  %195 = vmatprep.mubr.f32.mxu0 0.0
  %196 = vmatmul.mubr.f32.gmra.mrb[0].mxu0 %v68
  %v197 = vpop.f32.mrb[0].mxu0
  %v198 = vadd.f32 %v41, %v197
  %v199 = vpop.f32.mrb[0].mxu0
  %200 = vmatprep.mubr.f32.mxu0 0.0
  %201 = vmatmul.mubr.f32.gmra.mrb[0].mxu0 %v71
  %v202 = vpop.f32.mrb[0].mxu0
  %v203 = vadd.f32 %v41, %v202
  %v204 = vpop.f32.mrb[0].mxu0
  %205 = vmatprep.mubr.f32.mxu0 0.0
  %206 = vmatmul.mubr.f32.gmra.mrb[0].mxu0 %v74
  %v207 = vpop.f32.mrb[0].mxu0
  %v208 = vadd.f32 %v41, %v207
  %v209 = vpop.f32.mrb[0].mxu0
  %210 = vmatprep.mubr.f32.mxu0 0.0
  %211 = vmatmul.mubr.f32.gmra.mrb[0].mxu0 %v77
  %v212 = vpop.f32.mrb[0].mxu0
  %v213 = vadd.f32 %v41, %v212
  %v214 = vpop.f32.mrb[0].mxu0
  %215 = vmatprep.mubr.f32.mxu0 0.0
  %216 = vmatmul.mubr.f32.gmra.mrb[0].mxu0 %v80
  %v217 = vpop.f32.mrb[0].mxu0
  %v218 = vadd.f32 %v41, %v217
  %v219 = vpop.f32.mrb[0].mxu0
  %220 = vmatprep.mubr.f32.mxu0 0.0
  %221 = vmatmul.mubr.f32.gmra.mrb[0].mxu0 %v83
  %v222 = vpop.f32.mrb[0].mxu0
  %v223 = vadd.f32 %v41, %v222
  %v224 = vpop.f32.mrb[0].mxu0
  %225 = vmatprep.mubr.f32.mxu0 0.0
  %226 = vmatmul.mubr.f32.gmra.mrb[0].mxu0 %v86
  %v227 = vpop.f32.mrb[0].mxu0
  %v228 = vadd.f32 %v41, %v227
  %v229 = vpop.f32.mrb[0].mxu0
  %230 = vmatprep.mubr.f32.mxu0 0.0
  %231 = vmatmul.mubr.f32.gmra.mrb[0].mxu0 %v89
  %v232 = vpop.f32.mrb[0].mxu0
  %v233 = vadd.f32 %v41, %v232
  %v234 = vpop.f32.mrb[0].mxu0
  %235 = vdwg.mxu0
  %v236 = vsub.f32 0.0, %v158
  %v237 = vsub.f32 0.0, %v163
  %v238 = vsub.f32 0.0, %v168
  %v239 = vsub.f32 0.0, %v173
  %v240 = vsub.f32 0.0, %v178
  %v241 = vsub.f32 0.0, %v183
  %v242 = vsub.f32 0.0, %v188
  %v243 = vsub.f32 0.0, %v193
  %v244 = vsub.f32 0.0, %v198
  %v245 = vsub.f32 0.0, %v203
  %v246 = vsub.f32 0.0, %v208
  %v247 = vsub.f32 0.0, %v213
  %v248 = vsub.f32 0.0, %v218
  %v249 = vsub.f32 0.0, %v223
  %v250 = vsub.f32 0.0, %v228
  %v251 = vsub.f32 0.0, %v233
  %v252 = vmul.f32 %v236, 1.442695
  %v253 = vpow.pop %v252
  %v254 = vmul.f32 %v237, 1.442695
  %v255 = vpow.pop %v254
  %v256 = vmul.f32 %v238, 1.442695
  %v257 = vpow.pop %v256
  %v258 = vmul.f32 %v239, 1.442695
  %v259 = vpow.pop %v258
  %v260 = vmul.f32 %v240, 1.442695
  %v261 = vpow.pop %v260
  %v262 = vmul.f32 %v241, 1.442695
  %v263 = vpow.pop %v262
  %v264 = vmul.f32 %v242, 1.442695
  %v265 = vpow.pop %v264
  %v266 = vmul.f32 %v243, 1.442695
  %v267 = vpow.pop %v266
  %v268 = vmul.f32 %v244, 1.442695
  %v269 = vpow.pop %v268
  %v270 = vmul.f32 %v245, 1.442695
  %v271 = vpow.pop %v270
  %v272 = vmul.f32 %v246, 1.442695
  %v273 = vpow.pop %v272
  %v274 = vmul.f32 %v247, 1.442695
  %v275 = vpow.pop %v274
  %v276 = vmul.f32 %v248, 1.442695
  %v277 = vpow.pop %v276
  %v278 = vmul.f32 %v249, 1.442695
  %v279 = vpow.pop %v278
  %v280 = vmul.f32 %v250, 1.442695
  %v281 = vpow.pop %v280
  %v282 = vmul.f32 %v251, 1.442695
  %v283 = vpow.pop %v282
  %v284 = vadd.f32 %v253, 1.0
  %v285 = vadd.f32 %v255, 1.0
  %v286 = vadd.f32 %v257, 1.0
  %v287 = vadd.f32 %v259, 1.0
  %v288 = vadd.f32 %v261, 1.0
  %v289 = vadd.f32 %v263, 1.0
  %v290 = vadd.f32 %v265, 1.0
  %v291 = vadd.f32 %v267, 1.0
  %v292 = vadd.f32 %v269, 1.0
  %v293 = vadd.f32 %v271, 1.0
  %v294 = vadd.f32 %v273, 1.0
  %v295 = vadd.f32 %v275, 1.0
  %v296 = vadd.f32 %v277, 1.0
  %v297 = vadd.f32 %v279, 1.0
  %v298 = vadd.f32 %v281, 1.0
  %v299 = vadd.f32 %v283, 1.0
  %v300 = vrcp.pop %v284
  %v301 = vmul.f32 1.0, %v300
  %v302 = vrcp.pop %v285
  %v303 = vmul.f32 1.0, %v302
  %v304 = vrcp.pop %v286
  %v305 = vmul.f32 1.0, %v304
  %v306 = vrcp.pop %v287
  %v307 = vmul.f32 1.0, %v306
  %v308 = vrcp.pop %v288
  %v309 = vmul.f32 1.0, %v308
  %v310 = vrcp.pop %v289
  %v311 = vmul.f32 1.0, %v310
  %v312 = vrcp.pop %v290
  %v313 = vmul.f32 1.0, %v312
  %v314 = vrcp.pop %v291
  %v315 = vmul.f32 1.0, %v314
  %v316 = vrcp.pop %v292
  %v317 = vmul.f32 1.0, %v316
  %v318 = vrcp.pop %v293
  %v319 = vmul.f32 1.0, %v318
  %v320 = vrcp.pop %v294
  %v321 = vmul.f32 1.0, %v320
  %v322 = vrcp.pop %v295
  %v323 = vmul.f32 1.0, %v322
  %v324 = vrcp.pop %v296
  %v325 = vmul.f32 1.0, %v324
  %v326 = vrcp.pop %v297
  %v327 = vmul.f32 1.0, %v326
  %v328 = vrcp.pop %v298
  %v329 = vmul.f32 1.0, %v328
  %v330 = vrcp.pop %v299
  %v331 = vmul.f32 1.0, %v330
  %v332 = vld [vmem:[%s2 + $0x1] sm:$0x1]
  %v333 = vlaneseq
  %v334 = vshrl.u32 %v333, 7
  %v335 = vsub.s32 0, %v334
  %v336 = vrot.slane %v332, %v335
  %v337 = vmul.f32 %v301, %v336
  %v338 = vmul.f32 %v303, %v336
  %v339 = vmul.f32 %v305, %v336
  %v340 = vmul.f32 %v307, %v336
  %v341 = vmul.f32 %v309, %v336
  %v342 = vmul.f32 %v311, %v336
  %v343 = vmul.f32 %v313, %v336
  %v344 = vmul.f32 %v315, %v336
  %v345 = vmul.f32 %v317, %v336
  %v346 = vmul.f32 %v319, %v336
  %v347 = vmul.f32 %v321, %v336
  %v348 = vmul.f32 %v323, %v336
  %v349 = vmul.f32 %v325, %v336
  %v350 = vmul.f32 %v327, %v336
  %v351 = vmul.f32 %v329, %v336
  %v352 = vmul.f32 %v331, %v336
  %v353 = vld [vmem:[%s2 + $0x2] sm:$0x1]
  %v354 = vlaneseq
  %v355 = vshrl.u32 %v354, 7
  %v356 = vsub.s32 0, %v355
  %v357 = vrot.slane %v353, %v356
  %v358 = vadd.f32 %v337, %v357
  %v359 = vadd.f32 %v338, %v357
  %v360 = vadd.f32 %v339, %v357
  %v361 = vadd.f32 %v340, %v357
  %v362 = vadd.f32 %v341, %v357
  %v363 = vadd.f32 %v342, %v357
  %v364 = vadd.f32 %v343, %v357
  %v365 = vadd.f32 %v344, %v357
  %v366 = vadd.f32 %v345, %v357
  %v367 = vadd.f32 %v346, %v357
  %v368 = vadd.f32 %v347, %v357
  %v369 = vadd.f32 %v348, %v357
  %v370 = vadd.f32 %v349, %v357
  %v371 = vadd.f32 %v350, %v357
  %v372 = vadd.f32 %v351, %v357
  %v373 = vadd.f32 %v352, %v357
  %v374 = vld [vmem:[%s3] sm:$0xff]
  %v375 = vld [vmem:[%s3 + $0x8] sm:$0xff]
  %v376 = vld [vmem:[%s3 + $0x10] sm:$0xff]
  %v377 = vld [vmem:[%s3 + $0x18] sm:$0xff]
  %v378 = vld [vmem:[%s3 + $0x20] sm:$0xff]
  %v379 = vld [vmem:[%s3 + $0x28] sm:$0xff]
  %v380 = vld [vmem:[%s3 + $0x30] sm:$0xff]
  %v381 = vld [vmem:[%s3 + $0x38] sm:$0xff]
  %v382 = vld [vmem:[%s3 + $0x40] sm:$0xff]
  %v383 = vld [vmem:[%s3 + $0x48] sm:$0xff]
  %v384 = vld [vmem:[%s3 + $0x50] sm:$0xff]
  %v385 = vld [vmem:[%s3 + $0x58] sm:$0xff]
  %v386 = vld [vmem:[%s3 + $0x60] sm:$0xff]
  %v387 = vld [vmem:[%s3 + $0x68] sm:$0xff]
  %v388 = vld [vmem:[%s3 + $0x70] sm:$0xff]
  %v389 = vld [vmem:[%s3 + $0x78] sm:$0xff]
  %v390 = vld [vmem:[%s2 + $0x3] sm:$0x1]
  %392 = vset.pattern.permute.xlu0 0
  %393 = vperm.xlu0 %392, %v374
  %v394 = vpop.permute.xlu0 %393
  %397 = vset.pattern.permute.xlu0 0
  %398 = vperm.xlu0 %397, %v375
  %v399 = vpop.permute.xlu0 %398
  %402 = vset.pattern.permute.xlu0 0
  %403 = vperm.xlu0 %402, %v376
  %v404 = vpop.permute.xlu0 %403
  %407 = vset.pattern.permute.xlu0 0
  %408 = vperm.xlu0 %407, %v377
  %v409 = vpop.permute.xlu0 %408
  %412 = vset.pattern.permute.xlu0 0
  %413 = vperm.xlu0 %412, %v378
  %v414 = vpop.permute.xlu0 %413
  %417 = vset.pattern.permute.xlu0 0
  %418 = vperm.xlu0 %417, %v379
  %v419 = vpop.permute.xlu0 %418
  %422 = vset.pattern.permute.xlu0 0
  %423 = vperm.xlu0 %422, %v380
  %v424 = vpop.permute.xlu0 %423
  %427 = vset.pattern.permute.xlu0 0
  %428 = vperm.xlu0 %427, %v381
  %v429 = vpop.permute.xlu0 %428
  %432 = vset.pattern.permute.xlu0 0
  %433 = vperm.xlu0 %432, %v382
  %v434 = vpop.permute.xlu0 %433
  %437 = vset.pattern.permute.xlu0 0
  %438 = vperm.xlu0 %437, %v383
  %v439 = vpop.permute.xlu0 %438
  %442 = vset.pattern.permute.xlu0 0
  %443 = vperm.xlu0 %442, %v384
  %v444 = vpop.permute.xlu0 %443
  %447 = vset.pattern.permute.xlu0 0
  %448 = vperm.xlu0 %447, %v385
  %v449 = vpop.permute.xlu0 %448
  %452 = vset.pattern.permute.xlu0 0
  %453 = vperm.xlu0 %452, %v386
  %v454 = vpop.permute.xlu0 %453
  %457 = vset.pattern.permute.xlu0 0
  %458 = vperm.xlu0 %457, %v387
  %v459 = vpop.permute.xlu0 %458
  %462 = vset.pattern.permute.xlu0 0
  %463 = vperm.xlu0 %462, %v388
  %v464 = vpop.permute.xlu0 %463
  %467 = vset.pattern.permute.xlu0 0
  %468 = vperm.xlu0 %467, %v389
  %v469 = vpop.permute.xlu0 %468
  %v471 = vlaneseq
  %v472 = vshrl.u32 %v471, 7
  %v473 = vsub.s32 0, %v472
  %v474 = vrot.slane %v390, %v473
  %v475 = vmul.f32 %v394, %v474
  %v476 = vmul.f32 %v399, %v474
  %v477 = vmul.f32 %v404, %v474
  %v478 = vmul.f32 %v409, %v474
  %v479 = vmul.f32 %v414, %v474
  %v480 = vmul.f32 %v419, %v474
  %v481 = vmul.f32 %v424, %v474
  %v482 = vmul.f32 %v429, %v474
  %v483 = vmul.f32 %v434, %v474
  %v484 = vmul.f32 %v439, %v474
  %v485 = vmul.f32 %v444, %v474
  %v486 = vmul.f32 %v449, %v474
  %v487 = vmul.f32 %v454, %v474
  %v488 = vmul.f32 %v459, %v474
  %v489 = vmul.f32 %v464, %v474
  %v490 = vmul.f32 %v469, %v474
  %v491 = vld [vmem:[%s2 + $0x4] sm:$0x1]
  %492 = vset.pattern.permute.xlu0 1
  %493 = vperm.xlu0 %492, %v374
  %v494 = vpop.permute.xlu0 %493
  %496 = vset.pattern.permute.xlu0 1
  %497 = vperm.xlu0 %496, %v375
  %v498 = vpop.permute.xlu0 %497
  %500 = vset.pattern.permute.xlu0 1
  %501 = vperm.xlu0 %500, %v376
  %v502 = vpop.permute.xlu0 %501
  %504 = vset.pattern.permute.xlu0 1
  %505 = vperm.xlu0 %504, %v377
  %v506 = vpop.permute.xlu0 %505
  %508 = vset.pattern.permute.xlu0 1
  %509 = vperm.xlu0 %508, %v378
  %v510 = vpop.permute.xlu0 %509
  %512 = vset.pattern.permute.xlu0 1
  %513 = vperm.xlu0 %512, %v379
  %v514 = vpop.permute.xlu0 %513
  %516 = vset.pattern.permute.xlu0 1
  %517 = vperm.xlu0 %516, %v380
  %v518 = vpop.permute.xlu0 %517
  %520 = vset.pattern.permute.xlu0 1
  %521 = vperm.xlu0 %520, %v381
  %v522 = vpop.permute.xlu0 %521
  %524 = vset.pattern.permute.xlu0 1
  %525 = vperm.xlu0 %524, %v382
  %v526 = vpop.permute.xlu0 %525
  %528 = vset.pattern.permute.xlu0 1
  %529 = vperm.xlu0 %528, %v383
  %v530 = vpop.permute.xlu0 %529
  %532 = vset.pattern.permute.xlu0 1
  %533 = vperm.xlu0 %532, %v384
  %v534 = vpop.permute.xlu0 %533
  %536 = vset.pattern.permute.xlu0 1
  %537 = vperm.xlu0 %536, %v385
  %v538 = vpop.permute.xlu0 %537
  %540 = vset.pattern.permute.xlu0 1
  %541 = vperm.xlu0 %540, %v386
  %v542 = vpop.permute.xlu0 %541
  %544 = vset.pattern.permute.xlu0 1
  %545 = vperm.xlu0 %544, %v387
  %v546 = vpop.permute.xlu0 %545
  %548 = vset.pattern.permute.xlu0 1
  %549 = vperm.xlu0 %548, %v388
  %v550 = vpop.permute.xlu0 %549
  %552 = vset.pattern.permute.xlu0 1
  %553 = vperm.xlu0 %552, %v389
  %v554 = vpop.permute.xlu0 %553
  %v556 = vlaneseq
  %v557 = vshrl.u32 %v556, 7
  %v558 = vsub.s32 0, %v557
  %v559 = vrot.slane %v491, %v558
  %v560 = vmul.f32 %v494, %v559
  %v561 = vmul.f32 %v498, %v559
  %v562 = vmul.f32 %v502, %v559
  %v563 = vmul.f32 %v506, %v559
  %v564 = vmul.f32 %v510, %v559
  %v565 = vmul.f32 %v514, %v559
  %v566 = vmul.f32 %v518, %v559
  %v567 = vmul.f32 %v522, %v559
  %v568 = vmul.f32 %v526, %v559
  %v569 = vmul.f32 %v530, %v559
  %v570 = vmul.f32 %v534, %v559
  %v571 = vmul.f32 %v538, %v559
  %v572 = vmul.f32 %v542, %v559
  %v573 = vmul.f32 %v546, %v559
  %v574 = vmul.f32 %v550, %v559
  %v575 = vmul.f32 %v554, %v559
  %v576 = vadd.f32 %v475, %v560
  %v577 = vadd.f32 %v476, %v561
  %v578 = vadd.f32 %v477, %v562
  %v579 = vadd.f32 %v478, %v563
  %v580 = vadd.f32 %v479, %v564
  %v581 = vadd.f32 %v480, %v565
  %v582 = vadd.f32 %v481, %v566
  %v583 = vadd.f32 %v482, %v567
  %v584 = vadd.f32 %v483, %v568
  %v585 = vadd.f32 %v484, %v569
  %v586 = vadd.f32 %v485, %v570
  %v587 = vadd.f32 %v486, %v571
  %v588 = vadd.f32 %v487, %v572
  %v589 = vadd.f32 %v488, %v573
  %v590 = vadd.f32 %v489, %v574
  %v591 = vadd.f32 %v490, %v575
  %v592 = vld [vmem:[%s2 + $0x5] sm:$0x1]
  %593 = vset.pattern.permute.xlu0 2
  %594 = vperm.xlu0 %593, %v374
  %v595 = vpop.permute.xlu0 %594
  %597 = vset.pattern.permute.xlu0 2
  %598 = vperm.xlu0 %597, %v375
  %v599 = vpop.permute.xlu0 %598
  %601 = vset.pattern.permute.xlu0 2
  %602 = vperm.xlu0 %601, %v376
  %v603 = vpop.permute.xlu0 %602
  %605 = vset.pattern.permute.xlu0 2
  %606 = vperm.xlu0 %605, %v377
  %v607 = vpop.permute.xlu0 %606
  %609 = vset.pattern.permute.xlu0 2
  %610 = vperm.xlu0 %609, %v378
  %v611 = vpop.permute.xlu0 %610
  %613 = vset.pattern.permute.xlu0 2
  %614 = vperm.xlu0 %613, %v379
  %v615 = vpop.permute.xlu0 %614
  %617 = vset.pattern.permute.xlu0 2
  %618 = vperm.xlu0 %617, %v380
  %v619 = vpop.permute.xlu0 %618
  %621 = vset.pattern.permute.xlu0 2
  %622 = vperm.xlu0 %621, %v381
  %v623 = vpop.permute.xlu0 %622
  %625 = vset.pattern.permute.xlu0 2
  %626 = vperm.xlu0 %625, %v382
  %v627 = vpop.permute.xlu0 %626
  %629 = vset.pattern.permute.xlu0 2
  %630 = vperm.xlu0 %629, %v383
  %v631 = vpop.permute.xlu0 %630
  %633 = vset.pattern.permute.xlu0 2
  %634 = vperm.xlu0 %633, %v384
  %v635 = vpop.permute.xlu0 %634
  %637 = vset.pattern.permute.xlu0 2
  %638 = vperm.xlu0 %637, %v385
  %v639 = vpop.permute.xlu0 %638
  %641 = vset.pattern.permute.xlu0 2
  %642 = vperm.xlu0 %641, %v386
  %v643 = vpop.permute.xlu0 %642
  %645 = vset.pattern.permute.xlu0 2
  %646 = vperm.xlu0 %645, %v387
  %v647 = vpop.permute.xlu0 %646
  %649 = vset.pattern.permute.xlu0 2
  %650 = vperm.xlu0 %649, %v388
  %v651 = vpop.permute.xlu0 %650
  %653 = vset.pattern.permute.xlu0 2
  %654 = vperm.xlu0 %653, %v389
  %v655 = vpop.permute.xlu0 %654
  %v657 = vlaneseq
  %v658 = vshrl.u32 %v657, 7
  %v659 = vsub.s32 0, %v658
  %v660 = vrot.slane %v592, %v659
  %v661 = vmul.f32 %v595, %v660
  %v662 = vmul.f32 %v599, %v660
  %v663 = vmul.f32 %v603, %v660
  %v664 = vmul.f32 %v607, %v660
  %v665 = vmul.f32 %v611, %v660
  %v666 = vmul.f32 %v615, %v660
  %v667 = vmul.f32 %v619, %v660
  %v668 = vmul.f32 %v623, %v660
  %v669 = vmul.f32 %v627, %v660
  %v670 = vmul.f32 %v631, %v660
  %v671 = vmul.f32 %v635, %v660
  %v672 = vmul.f32 %v639, %v660
  %v673 = vmul.f32 %v643, %v660
  %v674 = vmul.f32 %v647, %v660
  %v675 = vmul.f32 %v651, %v660
  %v676 = vmul.f32 %v655, %v660
  %v677 = vadd.f32 %v576, %v661
  %v678 = vadd.f32 %v577, %v662
  %v679 = vadd.f32 %v578, %v663
  %v680 = vadd.f32 %v579, %v664
  %v681 = vadd.f32 %v580, %v665
  %v682 = vadd.f32 %v581, %v666
  %v683 = vadd.f32 %v582, %v667
  %v684 = vadd.f32 %v583, %v668
  %v685 = vadd.f32 %v584, %v669
  %v686 = vadd.f32 %v585, %v670
  %v687 = vadd.f32 %v586, %v671
  %v688 = vadd.f32 %v587, %v672
  %v689 = vadd.f32 %v588, %v673
  %v690 = vadd.f32 %v589, %v674
  %v691 = vadd.f32 %v590, %v675
  %v692 = vadd.f32 %v591, %v676
  %v693 = vadd.f32 %v677, %v358
  %v694 = vadd.f32 %v678, %v359
  %v695 = vadd.f32 %v679, %v360
  %v696 = vadd.f32 %v680, %v361
  %v697 = vadd.f32 %v681, %v362
  %v698 = vadd.f32 %v682, %v363
  %v699 = vadd.f32 %v683, %v364
  %v700 = vadd.f32 %v684, %v365
  %v701 = vadd.f32 %v685, %v366
  %v702 = vadd.f32 %v686, %v367
  %v703 = vadd.f32 %v687, %v368
  %v704 = vadd.f32 %v688, %v369
  %v705 = vadd.f32 %v689, %v370
  %v706 = vadd.f32 %v690, %v371
  %v707 = vadd.f32 %v691, %v372
  %v708 = vadd.f32 %v692, %v373
  %vm709 = vcmask 195584
  %710 = vst.msk [vmem:[%s4] sm:$0xff] %vm709, %v693
  %711 = vst.msk [vmem:[%s4 + $0x8] sm:$0xff] %vm709, %v694
  %712 = vst.msk [vmem:[%s4 + $0x10] sm:$0xff] %vm709, %v695
  %713 = vst.msk [vmem:[%s4 + $0x18] sm:$0xff] %vm709, %v696
  %714 = vst.msk [vmem:[%s4 + $0x20] sm:$0xff] %vm709, %v697
  %715 = vst.msk [vmem:[%s4 + $0x28] sm:$0xff] %vm709, %v698
  %716 = vst.msk [vmem:[%s4 + $0x30] sm:$0xff] %vm709, %v699
  %717 = vst.msk [vmem:[%s4 + $0x38] sm:$0xff] %vm709, %v700
  %718 = vst.msk [vmem:[%s4 + $0x40] sm:$0xff] %vm709, %v701
  %719 = vst.msk [vmem:[%s4 + $0x48] sm:$0xff] %vm709, %v702
  %720 = vst.msk [vmem:[%s4 + $0x50] sm:$0xff] %vm709, %v703
  %721 = vst.msk [vmem:[%s4 + $0x58] sm:$0xff] %vm709, %v704
  %722 = vst.msk [vmem:[%s4 + $0x60] sm:$0xff] %vm709, %v705
  %723 = vst.msk [vmem:[%s4 + $0x68] sm:$0xff] %vm709, %v706
  %724 = vst.msk [vmem:[%s4 + $0x70] sm:$0xff] %vm709, %v707
  %725 = vst.msk [vmem:[%s4 + $0x78] sm:$0xff] %vm709, %v708
  // Predicated region
  $region18: #{tpu_custom_call.1} parent=0 // pred_check
    _
  $region19: #{tpu_custom_call.1} parent=0 // pred_check_branch
    %727 = sbr.rel (0) target = $region21
  $region20: #{tpu_custom_call.1} parent=0 // pred_region
    _
  $region21: #{tpu_custom_call.1} parent=0 // pred_fallthru
    _
  // Predicated region
  $region22: #{tpu_custom_call.1} parent=0 // pred_check
    _
  $region23: #{tpu_custom_call.1} parent=0 // pred_check_branch
    %729 = sbr.rel (0) target = $region25
  $region24: #{tpu_custom_call.1} parent=0 // pred_region
    _
  $region25: #{tpu_custom_call.1} parent=0 // pred_fallthru
    _

</llo_original>
